<compile_context>
chip_gen: v5e
topology: v5e:2x2
jax: 0.10.0
libtpu: 0.0.40
codegen_flags: <defaults>
</compile_context>

<pallas_src>
import math

import jax
import jax.numpy as jnp
import numpy as np
from jax.experimental import pallas as pl
from jax.experimental.pallas import tpu as pltpu

OUT_COLS = 40          # fixed by the reference: torch.zeros((batch, 40))
LEAKY_SLOPE = 0.01     # torch.nn.LeakyReLU default negative_slope
B_SUBLANE = 8          # f32 sublane quantum: batch rows padded to multiple of 8


def _gru_seq_kernel(x_ref, wx_ref, bx_ref, wh_ref, bh_ref, wbig_ref, bf_ref,
                    out_ref):
    """Full GRU sequence + batched FC head inside one kernel.

    x_ref   : (S*Bp, D)   seq-major input, batch padded to Bp (multiple of 8)
    wx_ref  : (D, 3H)     x2h weight (pre-transposed)
    bx_ref  : (1, 3H)     x2h bias
    wh_ref  : (H, 3H)     h2h weight (pre-transposed)
    bh_ref  : (1, 3H)     h2h bias
    wbig_ref: (S*H, 40)   block-diagonal fc1 weight (column s <- fc_w for step s)
    bf_ref  : (1,)        fc1 bias (SMEM scalar)
    out_ref : (B, 40)     output buffer (float32)
    """
    H = wh_ref.shape[0]
    S = wbig_ref.shape[0] // H
    Bp = x_ref.shape[0] // S
    B = out_ref.shape[0]

    # Hoist every weight/bias load above the unrolled loop (one vld each).
    wx = wx_ref[...]            # (D, 3H)
    bx = bx_ref[...]            # (1, 3H)
    wh = wh_ref[...]            # (H, 3H)
    bh = bh_ref[...]            # (1, 3H)
    wbig = wbig_ref[...]        # (S*H, 40)
    bf = bf_ref[0]              # scalar from SMEM

    # x2h projection for ALL timesteps at once (no recurrence dependence).
    gate_x_all = jnp.dot(x_ref[...], wx,
                         preferred_element_type=jnp.float32) + bx   # (S*Bp, 3H)

    h = jnp.zeros((Bp, H), dtype=jnp.float32)
    hs = []
    # Static trip count (S=8) -> unrolled; only the h2h matmul is serial.
    # TODO(synk): switch to lax.fori_loop(..., unroll=True) with a VMEM scratch
    #             accumulator if S ever grows toward the 40-column limit (vreg
    #             pressure from the unrolled live ranges).
    for s in range(S):
        # Bp is a multiple of 8 -> this row slice is sublane-aligned (no
        # per-step relayout on the critical path).
        gate_x = gate_x_all[s * Bp:(s + 1) * Bp, :]                  # (Bp, 3H)
        gate_h = jnp.dot(h, wh,
                         preferred_element_type=jnp.float32) + bh    # (Bp, 3H)

        # Fused reset/input gates: one sigmoid over the contiguous 2H columns.
        rz = jax.nn.sigmoid(gate_x[:, :2 * H] + gate_h[:, :2 * H])   # (Bp, 2H)
        resetgate = rz[:, :H]
        inputgate = rz[:, H:]
        newgate = jnp.tanh(gate_x[:, 2 * H:] + resetgate * gate_h[:, 2 * H:])
        h = newgate + inputgate * (h - newgate)
        hs.append(h)

    # fc1 head + LeakyReLU once for ALL steps (post-loop, off the critical
    # recurrence path): (Bp, S*H) @ (S*H, 40) block-diagonal matmul.
    hcat = jnp.concatenate(hs, axis=1)                               # (Bp, S*H)
    pre = jnp.dot(hcat, wbig,
                  preferred_element_type=jnp.float32) + bf           # (Bp, 40)
    act = jnp.where(pre >= 0, pre, LEAKY_SLOPE * pre)
    # Columns >= S must stay exactly zero (torch.zeros((B, 40)) semantics).
    col = jax.lax.broadcasted_iota(jnp.int32, (Bp, OUT_COLS), 1)
    out_full = jnp.where(col < S, act, 0.0)
    out_ref[...] = out_full[:B, :]                                   # one store


def prepare_params(params):
    """One-time weight preprocessing (hoisted out of the per-call path)."""
    x2h_w, x2h_b, h2h_w, h2h_b, fc_w, fc_b = params
    H = h2h_w.shape[1]
    wx = jnp.transpose(x2h_w).astype(jnp.float32)                # (D, 3H)
    bx = x2h_b.reshape(1, 3 * H).astype(jnp.float32)             # (1, 3H)
    wh = jnp.transpose(h2h_w).astype(jnp.float32)                # (H, 3H)
    bh = h2h_b.reshape(1, 3 * H).astype(jnp.float32)             # (1, 3H)
    wf = fc_w.reshape(H).astype(jnp.float32)                     # (H,)
    bf = fc_b.reshape(1).astype(jnp.float32)                     # (1,) -> SMEM
    return (wx, bx, wh, bh, wf, bf)


@jax.jit
def gru_model_forward(x, prepped):
    """x: (B, S, D) float32.  prepped: output of prepare_params.
    Returns (B, 40) float32."""
    B, S, D = x.shape
    if S > OUT_COLS:
        raise ValueError(
            f"seq_len={S} exceeds the fixed {OUT_COLS}-column output buffer "
            "of GRUModel.forward")
    wx, bx, wh, bh, wf, bf = prepped
    H = wh.shape[0]

    # Per-call layout plumbing only: seq-major input, batch padded to a
    # multiple of 8 sublanes so per-step slices inside the kernel stay aligned.
    Bp = B_SUBLANE * ((B + B_SUBLANE - 1) // B_SUBLANE)
    x_t = jnp.transpose(x, (1, 0, 2)).astype(jnp.float32)        # (S, B, D)
    x_p = jnp.zeros((S, Bp, D), jnp.float32).at[:, :B, :].set(x_t)
    x_flat = x_p.reshape(S * Bp, D)

    # Block-diagonal fc1 weight: wbig[s*H + k, c] = fc_w[k] if c == s else 0.
    wbig = (jnp.eye(S, OUT_COLS, dtype=jnp.float32)[:, None, :]
            * wf[None, :, None]).reshape(S * H, OUT_COLS)

    vmem = pltpu.MemorySpace.VMEM
    smem = pltpu.MemorySpace.SMEM
    return pl.pallas_call(
        _gru_seq_kernel,
        out_shape=jax.ShapeDtypeStruct((B, OUT_COLS), jnp.float32),
        in_specs=[
            pl.BlockSpec(memory_space=vmem),   # x (S*Bp, D)
            pl.BlockSpec(memory_space=vmem),   # wx
            pl.BlockSpec(memory_space=vmem),   # bx
            pl.BlockSpec(memory_space=vmem),   # wh
            pl.BlockSpec(memory_space=vmem),   # bh
            pl.BlockSpec(memory_space=vmem),   # wbig
            pl.BlockSpec(memory_space=smem),   # bf scalar
        ],
        out_specs=pl.BlockSpec(memory_space=vmem),
    )(x_flat, wx, bx, wh, bh, wbig, bf)


def _reference_forward(x, params):
    """Pure-JAX reference of GRUModel.forward (rc_seq cell only is used)."""
    x2h_w, x2h_b, h2h_w, h2h_b, fc_w, fc_b = params
    B, S, _ = x.shape
    H = h2h_w.shape[1]
    out_val = jnp.zeros((B, OUT_COLS), dtype=jnp.float32)
    h = jnp.zeros((B, H), dtype=jnp.float32)
    for s in range(S):
        gate_x = x[:, s, :] @ x2h_w.T + x2h_b
        gate_h = h @ h2h_w.T + h2h_b
        i_r, i_i, i_n = jnp.split(gate_x, 3, axis=1)
        h_r, h_i, h_n = jnp.split(gate_h, 3, axis=1)
        r = jax.nn.sigmoid(i_r + h_r)
        z = jax.nn.sigmoid(i_i + h_i)
        n = jnp.tanh(i_n + r * h_n)
        h = n + z * (h - n)
        o = h @ fc_w.T + fc_b
        o = jnp.where(o >= 0, o, LEAKY_SLOPE * o)
        out_val = out_val.at[:, s].set(o[:, 0])
    return out_val


def init_params(key, input_dim, hidden_dim, output_dim):
    """Deterministic init mirroring GRUCell.reset_parameters (U[-std, std],
    std = 1/sqrt(hidden_dim)) and nn.Linear shapes from __init__."""
    std = 1.0 / math.sqrt(hidden_dim)
    ks = jax.random.split(key, 6)
    u = lambda k, shape: jax.random.uniform(
        k, shape, dtype=jnp.float32, minval=-std, maxval=std)
    x2h_w = u(ks[0], (3 * hidden_dim, input_dim))
    x2h_b = u(ks[1], (3 * hidden_dim,))
    h2h_w = u(ks[2], (3 * hidden_dim, hidden_dim))
    h2h_b = u(ks[3], (3 * hidden_dim,))
    fc_w = u(ks[4], (output_dim, hidden_dim))   # output_dim = 1
    fc_b = u(ks[5], (output_dim,))
    return (x2h_w, x2h_b, h2h_w, h2h_b, fc_w, fc_b)


if __name__ == "__main__":
    # Small shapes consistent with the module: output_dim must be 1, seq <= 40.
    batch, seq, input_dim, hidden_dim, output_dim = 2, 8, 4, 32, 1

    key = jax.random.PRNGKey(0)
    k_x, k_p = jax.random.split(key)
    x = jax.random.normal(k_x, (batch, seq, input_dim), dtype=jnp.float32)
    params = init_params(k_p, input_dim, hidden_dim, output_dim)
    prepped = prepare_params(params)   # one-time, outside the per-call path

    out = gru_model_forward(x, prepped)
    out = jax.block_until_ready(out)

    ref = jax.block_until_ready(_reference_forward(x, params))
    assert out.shape == (batch, OUT_COLS)
    np.testing.assert_allclose(np.asarray(out), np.asarray(ref),
                               rtol=1e-5, atol=1e-5)

    print("KERNEL_OK")
</pallas_src>

<mosaic_0001>
module attributes {stable_mosaic.version = 11 : i64} {
  func.func @_gru_seq_kernel(%arg0: memref<64x4xf32, #tpu.memory_space<vmem>>, %arg1: memref<4x96xf32, #tpu.memory_space<vmem>>, %arg2: memref<1x96xf32, #tpu.memory_space<vmem>>, %arg3: memref<32x96xf32, #tpu.memory_space<vmem>>, %arg4: memref<1x96xf32, #tpu.memory_space<vmem>>, %arg5: memref<256x40xf32, #tpu.memory_space<vmem>>, %arg6: memref<1xf32, #tpu.memory_space<smem>>, %arg7: memref<2x40xf32, #tpu.memory_space<vmem>>) attributes {dimension_semantics = [], scalar_prefetch = 0 : i64, scratch_operands = 0 : i64, tpu.core_type = #tpu.core_type<tc>} {
    %c0 = arith.constant 0 : index
    %c0_0 = arith.constant 0 : index
    %0 = vector.load %arg1[%c0, %c0_0] : memref<4x96xf32, #tpu.memory_space<vmem>>, vector<4x96xf32>
    %c0_1 = arith.constant 0 : index
    %c0_2 = arith.constant 0 : index
    %1 = vector.load %arg2[%c0_1, %c0_2] : memref<1x96xf32, #tpu.memory_space<vmem>>, vector<1x96xf32>
    %c0_3 = arith.constant 0 : index
    %c0_4 = arith.constant 0 : index
    %2 = vector.load %arg3[%c0_3, %c0_4] : memref<32x96xf32, #tpu.memory_space<vmem>>, vector<32x96xf32>
    %c0_5 = arith.constant 0 : index
    %c0_6 = arith.constant 0 : index
    %3 = vector.load %arg4[%c0_5, %c0_6] : memref<1x96xf32, #tpu.memory_space<vmem>>, vector<1x96xf32>
    %c0_7 = arith.constant 0 : index
    %c0_8 = arith.constant 0 : index
    %4 = vector.load %arg5[%c0_7, %c0_8] : memref<256x40xf32, #tpu.memory_space<vmem>>, vector<256x40xf32>
    %c0_9 = arith.constant 0 : index
    %5 = memref.load %arg6[%c0_9] : memref<1xf32, #tpu.memory_space<smem>>
    %c0_10 = arith.constant 0 : index
    %c0_11 = arith.constant 0 : index
    %6 = vector.load %arg0[%c0_10, %c0_11] : memref<64x4xf32, #tpu.memory_space<vmem>>, vector<64x4xf32>
    %cst = arith.constant dense<0.000000e+00> : vector<64x96xf32>
    %7 = tpu.matmul %6, %0, %cst {dimension_numbers = #tpu.dot_dimension_numbers<[1], [0], [0], [1], [0, 0, 1, 1], [], []>} : vector<64x4xf32>, vector<4x96xf32>, vector<64x96xf32> -> vector<64x96xf32>
    %8 = vector.broadcast %1 : vector<1x96xf32> to vector<64x96xf32>
    %9 = arith.addf %7, %8 : vector<64x96xf32>
    %cst_12 = arith.constant 0.000000e+00 : f32
    %10 = vector.broadcast %cst_12 : f32 to vector<8x32xf32>
    %11 = vector.extract_strided_slice %9 {offsets = [0, 0], sizes = [8, 96], strides = [1, 1]} : vector<64x96xf32> to vector<8x96xf32>
    %cst_13 = arith.constant dense<0.000000e+00> : vector<8x96xf32>
    %12 = tpu.matmul %10, %2, %cst_13 {dimension_numbers = #tpu.dot_dimension_numbers<[1], [0], [0], [1], [0, 0, 1, 1], [], []>} : vector<8x32xf32>, vector<32x96xf32>, vector<8x96xf32> -> vector<8x96xf32>
    %13 = vector.broadcast %3 : vector<1x96xf32> to vector<8x96xf32>
    %14 = arith.addf %12, %13 : vector<8x96xf32>
    %15 = vector.extract_strided_slice %11 {offsets = [0, 0], sizes = [8, 64], strides = [1, 1]} : vector<8x96xf32> to vector<8x64xf32>
    %16 = vector.extract_strided_slice %14 {offsets = [0, 0], sizes = [8, 64], strides = [1, 1]} : vector<8x96xf32> to vector<8x64xf32>
    %17 = arith.addf %15, %16 : vector<8x64xf32>
    %18 = arith.negf %17 : vector<8x64xf32>
    %19 = math.exp %18 : vector<8x64xf32>
    %cst_14 = arith.constant 1.000000e+00 : f32
    %20 = vector.broadcast %cst_14 : f32 to vector<8x64xf32>
    %21 = arith.addf %20, %19 : vector<8x64xf32>
    %22 = arith.divf %20, %21 : vector<8x64xf32>
    %23 = vector.extract_strided_slice %22 {offsets = [0, 0], sizes = [8, 32], strides = [1, 1]} : vector<8x64xf32> to vector<8x32xf32>
    %24 = vector.extract_strided_slice %22 {offsets = [0, 32], sizes = [8, 32], strides = [1, 1]} : vector<8x64xf32> to vector<8x32xf32>
    %25 = vector.extract_strided_slice %11 {offsets = [0, 64], sizes = [8, 32], strides = [1, 1]} : vector<8x96xf32> to vector<8x32xf32>
    %26 = vector.extract_strided_slice %14 {offsets = [0, 64], sizes = [8, 32], strides = [1, 1]} : vector<8x96xf32> to vector<8x32xf32>
    %27 = arith.mulf %23, %26 : vector<8x32xf32>
    %28 = arith.addf %25, %27 : vector<8x32xf32>
    %29 = math.tanh %28 : vector<8x32xf32>
    %30 = arith.subf %10, %29 : vector<8x32xf32>
    %31 = arith.mulf %24, %30 : vector<8x32xf32>
    %32 = arith.addf %29, %31 : vector<8x32xf32>
    %33 = vector.extract_strided_slice %9 {offsets = [8, 0], sizes = [8, 96], strides = [1, 1]} : vector<64x96xf32> to vector<8x96xf32>
    %cst_15 = arith.constant dense<0.000000e+00> : vector<8x96xf32>
    %34 = tpu.matmul %32, %2, %cst_15 {dimension_numbers = #tpu.dot_dimension_numbers<[1], [0], [0], [1], [0, 0, 1, 1], [], []>} : vector<8x32xf32>, vector<32x96xf32>, vector<8x96xf32> -> vector<8x96xf32>
    %35 = vector.broadcast %3 : vector<1x96xf32> to vector<8x96xf32>
    %36 = arith.addf %34, %35 : vector<8x96xf32>
    %37 = vector.extract_strided_slice %33 {offsets = [0, 0], sizes = [8, 64], strides = [1, 1]} : vector<8x96xf32> to vector<8x64xf32>
    %38 = vector.extract_strided_slice %36 {offsets = [0, 0], sizes = [8, 64], strides = [1, 1]} : vector<8x96xf32> to vector<8x64xf32>
    %39 = arith.addf %37, %38 : vector<8x64xf32>
    %40 = arith.negf %39 : vector<8x64xf32>
    %41 = math.exp %40 : vector<8x64xf32>
    %cst_16 = arith.constant 1.000000e+00 : f32
    %42 = vector.broadcast %cst_16 : f32 to vector<8x64xf32>
    %43 = arith.addf %42, %41 : vector<8x64xf32>
    %44 = arith.divf %42, %43 : vector<8x64xf32>
    %45 = vector.extract_strided_slice %44 {offsets = [0, 0], sizes = [8, 32], strides = [1, 1]} : vector<8x64xf32> to vector<8x32xf32>
    %46 = vector.extract_strided_slice %44 {offsets = [0, 32], sizes = [8, 32], strides = [1, 1]} : vector<8x64xf32> to vector<8x32xf32>
    %47 = vector.extract_strided_slice %33 {offsets = [0, 64], sizes = [8, 32], strides = [1, 1]} : vector<8x96xf32> to vector<8x32xf32>
    %48 = vector.extract_strided_slice %36 {offsets = [0, 64], sizes = [8, 32], strides = [1, 1]} : vector<8x96xf32> to vector<8x32xf32>
    %49 = arith.mulf %45, %48 : vector<8x32xf32>
    %50 = arith.addf %47, %49 : vector<8x32xf32>
    %51 = math.tanh %50 : vector<8x32xf32>
    %52 = arith.subf %32, %51 : vector<8x32xf32>
    %53 = arith.mulf %46, %52 : vector<8x32xf32>
    %54 = arith.addf %51, %53 : vector<8x32xf32>
    %55 = vector.extract_strided_slice %9 {offsets = [16, 0], sizes = [8, 96], strides = [1, 1]} : vector<64x96xf32> to vector<8x96xf32>
    %cst_17 = arith.constant dense<0.000000e+00> : vector<8x96xf32>
    %56 = tpu.matmul %54, %2, %cst_17 {dimension_numbers = #tpu.dot_dimension_numbers<[1], [0], [0], [1], [0, 0, 1, 1], [], []>} : vector<8x32xf32>, vector<32x96xf32>, vector<8x96xf32> -> vector<8x96xf32>
    %57 = vector.broadcast %3 : vector<1x96xf32> to vector<8x96xf32>
    %58 = arith.addf %56, %57 : vector<8x96xf32>
    %59 = vector.extract_strided_slice %55 {offsets = [0, 0], sizes = [8, 64], strides = [1, 1]} : vector<8x96xf32> to vector<8x64xf32>
    %60 = vector.extract_strided_slice %58 {offsets = [0, 0], sizes = [8, 64], strides = [1, 1]} : vector<8x96xf32> to vector<8x64xf32>
    %61 = arith.addf %59, %60 : vector<8x64xf32>
    %62 = arith.negf %61 : vector<8x64xf32>
    %63 = math.exp %62 : vector<8x64xf32>
    %cst_18 = arith.constant 1.000000e+00 : f32
    %64 = vector.broadcast %cst_18 : f32 to vector<8x64xf32>
    %65 = arith.addf %64, %63 : vector<8x64xf32>
    %66 = arith.divf %64, %65 : vector<8x64xf32>
    %67 = vector.extract_strided_slice %66 {offsets = [0, 0], sizes = [8, 32], strides = [1, 1]} : vector<8x64xf32> to vector<8x32xf32>
    %68 = vector.extract_strided_slice %66 {offsets = [0, 32], sizes = [8, 32], strides = [1, 1]} : vector<8x64xf32> to vector<8x32xf32>
    %69 = vector.extract_strided_slice %55 {offsets = [0, 64], sizes = [8, 32], strides = [1, 1]} : vector<8x96xf32> to vector<8x32xf32>
    %70 = vector.extract_strided_slice %58 {offsets = [0, 64], sizes = [8, 32], strides = [1, 1]} : vector<8x96xf32> to vector<8x32xf32>
    %71 = arith.mulf %67, %70 : vector<8x32xf32>
    %72 = arith.addf %69, %71 : vector<8x32xf32>
    %73 = math.tanh %72 : vector<8x32xf32>
    %74 = arith.subf %54, %73 : vector<8x32xf32>
    %75 = arith.mulf %68, %74 : vector<8x32xf32>
    %76 = arith.addf %73, %75 : vector<8x32xf32>
    %77 = vector.extract_strided_slice %9 {offsets = [24, 0], sizes = [8, 96], strides = [1, 1]} : vector<64x96xf32> to vector<8x96xf32>
    %cst_19 = arith.constant dense<0.000000e+00> : vector<8x96xf32>
    %78 = tpu.matmul %76, %2, %cst_19 {dimension_numbers = #tpu.dot_dimension_numbers<[1], [0], [0], [1], [0, 0, 1, 1], [], []>} : vector<8x32xf32>, vector<32x96xf32>, vector<8x96xf32> -> vector<8x96xf32>
    %79 = vector.broadcast %3 : vector<1x96xf32> to vector<8x96xf32>
    %80 = arith.addf %78, %79 : vector<8x96xf32>
    %81 = vector.extract_strided_slice %77 {offsets = [0, 0], sizes = [8, 64], strides = [1, 1]} : vector<8x96xf32> to vector<8x64xf32>
    %82 = vector.extract_strided_slice %80 {offsets = [0, 0], sizes = [8, 64], strides = [1, 1]} : vector<8x96xf32> to vector<8x64xf32>
    %83 = arith.addf %81, %82 : vector<8x64xf32>
    %84 = arith.negf %83 : vector<8x64xf32>
    %85 = math.exp %84 : vector<8x64xf32>
    %cst_20 = arith.constant 1.000000e+00 : f32
    %86 = vector.broadcast %cst_20 : f32 to vector<8x64xf32>
    %87 = arith.addf %86, %85 : vector<8x64xf32>
    %88 = arith.divf %86, %87 : vector<8x64xf32>
    %89 = vector.extract_strided_slice %88 {offsets = [0, 0], sizes = [8, 32], strides = [1, 1]} : vector<8x64xf32> to vector<8x32xf32>
    %90 = vector.extract_strided_slice %88 {offsets = [0, 32], sizes = [8, 32], strides = [1, 1]} : vector<8x64xf32> to vector<8x32xf32>
    %91 = vector.extract_strided_slice %77 {offsets = [0, 64], sizes = [8, 32], strides = [1, 1]} : vector<8x96xf32> to vector<8x32xf32>
    %92 = vector.extract_strided_slice %80 {offsets = [0, 64], sizes = [8, 32], strides = [1, 1]} : vector<8x96xf32> to vector<8x32xf32>
    %93 = arith.mulf %89, %92 : vector<8x32xf32>
    %94 = arith.addf %91, %93 : vector<8x32xf32>
    %95 = math.tanh %94 : vector<8x32xf32>
    %96 = arith.subf %76, %95 : vector<8x32xf32>
    %97 = arith.mulf %90, %96 : vector<8x32xf32>
    %98 = arith.addf %95, %97 : vector<8x32xf32>
    %99 = vector.extract_strided_slice %9 {offsets = [32, 0], sizes = [8, 96], strides = [1, 1]} : vector<64x96xf32> to vector<8x96xf32>
    %cst_21 = arith.constant dense<0.000000e+00> : vector<8x96xf32>
    %100 = tpu.matmul %98, %2, %cst_21 {dimension_numbers = #tpu.dot_dimension_numbers<[1], [0], [0], [1], [0, 0, 1, 1], [], []>} : vector<8x32xf32>, vector<32x96xf32>, vector<8x96xf32> -> vector<8x96xf32>
    %101 = vector.broadcast %3 : vector<1x96xf32> to vector<8x96xf32>
    %102 = arith.addf %100, %101 : vector<8x96xf32>
    %103 = vector.extract_strided_slice %99 {offsets = [0, 0], sizes = [8, 64], strides = [1, 1]} : vector<8x96xf32> to vector<8x64xf32>
    %104 = vector.extract_strided_slice %102 {offsets = [0, 0], sizes = [8, 64], strides = [1, 1]} : vector<8x96xf32> to vector<8x64xf32>
    %105 = arith.addf %103, %104 : vector<8x64xf32>
    %106 = arith.negf %105 : vector<8x64xf32>
    %107 = math.exp %106 : vector<8x64xf32>
    %cst_22 = arith.constant 1.000000e+00 : f32
    %108 = vector.broadcast %cst_22 : f32 to vector<8x64xf32>
    %109 = arith.addf %108, %107 : vector<8x64xf32>
    %110 = arith.divf %108, %109 : vector<8x64xf32>
    %111 = vector.extract_strided_slice %110 {offsets = [0, 0], sizes = [8, 32], strides = [1, 1]} : vector<8x64xf32> to vector<8x32xf32>
    %112 = vector.extract_strided_slice %110 {offsets = [0, 32], sizes = [8, 32], strides = [1, 1]} : vector<8x64xf32> to vector<8x32xf32>
    %113 = vector.extract_strided_slice %99 {offsets = [0, 64], sizes = [8, 32], strides = [1, 1]} : vector<8x96xf32> to vector<8x32xf32>
    %114 = vector.extract_strided_slice %102 {offsets = [0, 64], sizes = [8, 32], strides = [1, 1]} : vector<8x96xf32> to vector<8x32xf32>
    %115 = arith.mulf %111, %114 : vector<8x32xf32>
    %116 = arith.addf %113, %115 : vector<8x32xf32>
    %117 = math.tanh %116 : vector<8x32xf32>
    %118 = arith.subf %98, %117 : vector<8x32xf32>
    %119 = arith.mulf %112, %118 : vector<8x32xf32>
    %120 = arith.addf %117, %119 : vector<8x32xf32>
    %121 = vector.extract_strided_slice %9 {offsets = [40, 0], sizes = [8, 96], strides = [1, 1]} : vector<64x96xf32> to vector<8x96xf32>
    %cst_23 = arith.constant dense<0.000000e+00> : vector<8x96xf32>
    %122 = tpu.matmul %120, %2, %cst_23 {dimension_numbers = #tpu.dot_dimension_numbers<[1], [0], [0], [1], [0, 0, 1, 1], [], []>} : vector<8x32xf32>, vector<32x96xf32>, vector<8x96xf32> -> vector<8x96xf32>
    %123 = vector.broadcast %3 : vector<1x96xf32> to vector<8x96xf32>
    %124 = arith.addf %122, %123 : vector<8x96xf32>
    %125 = vector.extract_strided_slice %121 {offsets = [0, 0], sizes = [8, 64], strides = [1, 1]} : vector<8x96xf32> to vector<8x64xf32>
    %126 = vector.extract_strided_slice %124 {offsets = [0, 0], sizes = [8, 64], strides = [1, 1]} : vector<8x96xf32> to vector<8x64xf32>
    %127 = arith.addf %125, %126 : vector<8x64xf32>
    %128 = arith.negf %127 : vector<8x64xf32>
    %129 = math.exp %128 : vector<8x64xf32>
    %cst_24 = arith.constant 1.000000e+00 : f32
    %130 = vector.broadcast %cst_24 : f32 to vector<8x64xf32>
    %131 = arith.addf %130, %129 : vector<8x64xf32>
    %132 = arith.divf %130, %131 : vector<8x64xf32>
    %133 = vector.extract_strided_slice %132 {offsets = [0, 0], sizes = [8, 32], strides = [1, 1]} : vector<8x64xf32> to vector<8x32xf32>
    %134 = vector.extract_strided_slice %132 {offsets = [0, 32], sizes = [8, 32], strides = [1, 1]} : vector<8x64xf32> to vector<8x32xf32>
    %135 = vector.extract_strided_slice %121 {offsets = [0, 64], sizes = [8, 32], strides = [1, 1]} : vector<8x96xf32> to vector<8x32xf32>
    %136 = vector.extract_strided_slice %124 {offsets = [0, 64], sizes = [8, 32], strides = [1, 1]} : vector<8x96xf32> to vector<8x32xf32>
    %137 = arith.mulf %133, %136 : vector<8x32xf32>
    %138 = arith.addf %135, %137 : vector<8x32xf32>
    %139 = math.tanh %138 : vector<8x32xf32>
    %140 = arith.subf %120, %139 : vector<8x32xf32>
    %141 = arith.mulf %134, %140 : vector<8x32xf32>
    %142 = arith.addf %139, %141 : vector<8x32xf32>
    %143 = vector.extract_strided_slice %9 {offsets = [48, 0], sizes = [8, 96], strides = [1, 1]} : vector<64x96xf32> to vector<8x96xf32>
    %cst_25 = arith.constant dense<0.000000e+00> : vector<8x96xf32>
    %144 = tpu.matmul %142, %2, %cst_25 {dimension_numbers = #tpu.dot_dimension_numbers<[1], [0], [0], [1], [0, 0, 1, 1], [], []>} : vector<8x32xf32>, vector<32x96xf32>, vector<8x96xf32> -> vector<8x96xf32>
    %145 = vector.broadcast %3 : vector<1x96xf32> to vector<8x96xf32>
    %146 = arith.addf %144, %145 : vector<8x96xf32>
    %147 = vector.extract_strided_slice %143 {offsets = [0, 0], sizes = [8, 64], strides = [1, 1]} : vector<8x96xf32> to vector<8x64xf32>
    %148 = vector.extract_strided_slice %146 {offsets = [0, 0], sizes = [8, 64], strides = [1, 1]} : vector<8x96xf32> to vector<8x64xf32>
    %149 = arith.addf %147, %148 : vector<8x64xf32>
    %150 = arith.negf %149 : vector<8x64xf32>
    %151 = math.exp %150 : vector<8x64xf32>
    %cst_26 = arith.constant 1.000000e+00 : f32
    %152 = vector.broadcast %cst_26 : f32 to vector<8x64xf32>
    %153 = arith.addf %152, %151 : vector<8x64xf32>
    %154 = arith.divf %152, %153 : vector<8x64xf32>
    %155 = vector.extract_strided_slice %154 {offsets = [0, 0], sizes = [8, 32], strides = [1, 1]} : vector<8x64xf32> to vector<8x32xf32>
    %156 = vector.extract_strided_slice %154 {offsets = [0, 32], sizes = [8, 32], strides = [1, 1]} : vector<8x64xf32> to vector<8x32xf32>
    %157 = vector.extract_strided_slice %143 {offsets = [0, 64], sizes = [8, 32], strides = [1, 1]} : vector<8x96xf32> to vector<8x32xf32>
    %158 = vector.extract_strided_slice %146 {offsets = [0, 64], sizes = [8, 32], strides = [1, 1]} : vector<8x96xf32> to vector<8x32xf32>
    %159 = arith.mulf %155, %158 : vector<8x32xf32>
    %160 = arith.addf %157, %159 : vector<8x32xf32>
    %161 = math.tanh %160 : vector<8x32xf32>
    %162 = arith.subf %142, %161 : vector<8x32xf32>
    %163 = arith.mulf %156, %162 : vector<8x32xf32>
    %164 = arith.addf %161, %163 : vector<8x32xf32>
    %165 = vector.extract_strided_slice %9 {offsets = [56, 0], sizes = [8, 96], strides = [1, 1]} : vector<64x96xf32> to vector<8x96xf32>
    %cst_27 = arith.constant dense<0.000000e+00> : vector<8x96xf32>
    %166 = tpu.matmul %164, %2, %cst_27 {dimension_numbers = #tpu.dot_dimension_numbers<[1], [0], [0], [1], [0, 0, 1, 1], [], []>} : vector<8x32xf32>, vector<32x96xf32>, vector<8x96xf32> -> vector<8x96xf32>
    %167 = vector.broadcast %3 : vector<1x96xf32> to vector<8x96xf32>
    %168 = arith.addf %166, %167 : vector<8x96xf32>
    %169 = vector.extract_strided_slice %165 {offsets = [0, 0], sizes = [8, 64], strides = [1, 1]} : vector<8x96xf32> to vector<8x64xf32>
    %170 = vector.extract_strided_slice %168 {offsets = [0, 0], sizes = [8, 64], strides = [1, 1]} : vector<8x96xf32> to vector<8x64xf32>
    %171 = arith.addf %169, %170 : vector<8x64xf32>
    %172 = arith.negf %171 : vector<8x64xf32>
    %173 = math.exp %172 : vector<8x64xf32>
    %cst_28 = arith.constant 1.000000e+00 : f32
    %174 = vector.broadcast %cst_28 : f32 to vector<8x64xf32>
    %175 = arith.addf %174, %173 : vector<8x64xf32>
    %176 = arith.divf %174, %175 : vector<8x64xf32>
    %177 = vector.extract_strided_slice %176 {offsets = [0, 0], sizes = [8, 32], strides = [1, 1]} : vector<8x64xf32> to vector<8x32xf32>
    %178 = vector.extract_strided_slice %176 {offsets = [0, 32], sizes = [8, 32], strides = [1, 1]} : vector<8x64xf32> to vector<8x32xf32>
    %179 = vector.extract_strided_slice %165 {offsets = [0, 64], sizes = [8, 32], strides = [1, 1]} : vector<8x96xf32> to vector<8x32xf32>
    %180 = vector.extract_strided_slice %168 {offsets = [0, 64], sizes = [8, 32], strides = [1, 1]} : vector<8x96xf32> to vector<8x32xf32>
    %181 = arith.mulf %177, %180 : vector<8x32xf32>
    %182 = arith.addf %179, %181 : vector<8x32xf32>
    %183 = math.tanh %182 : vector<8x32xf32>
    %184 = arith.subf %164, %183 : vector<8x32xf32>
    %185 = arith.mulf %178, %184 : vector<8x32xf32>
    %186 = arith.addf %183, %185 : vector<8x32xf32>
    %187 = tpu.concatenate %32, %54, %76, %98, %120, %142, %164, %186 in 1 : vector<8x32xf32>, vector<8x32xf32>, vector<8x32xf32>, vector<8x32xf32>, vector<8x32xf32>, vector<8x32xf32>, vector<8x32xf32>, vector<8x32xf32> -> vector<8x256xf32>
    %cst_29 = arith.constant dense<0.000000e+00> : vector<8x40xf32>
    %188 = tpu.matmul %187, %4, %cst_29 {dimension_numbers = #tpu.dot_dimension_numbers<[1], [0], [0], [1], [0, 0, 1, 1], [], []>} : vector<8x256xf32>, vector<256x40xf32>, vector<8x40xf32> -> vector<8x40xf32>
    %189 = vector.broadcast %5 : f32 to vector<8x40xf32>
    %190 = arith.addf %188, %189 : vector<8x40xf32>
    %cst_30 = arith.constant 0.000000e+00 : f32
    %191 = vector.broadcast %cst_30 : f32 to vector<8x40xf32>
    %192 = arith.cmpf oge, %190, %191 : vector<8x40xf32>
    %cst_31 = arith.constant 0.00999999977 : f32
    %193 = vector.broadcast %cst_31 : f32 to vector<8x40xf32>
    %194 = arith.mulf %193, %190 : vector<8x40xf32>
    %195 = arith.select %192, %190, %194 : vector<8x40xi1>, vector<8x40xf32>
    %196 = tpu.iota {dimensions = array<i32: 1>} : vector<8x40xi32>
    %c8_i32 = arith.constant 8 : i32
    %197 = vector.broadcast %c8_i32 : i32 to vector<8x40xi32>
    %198 = arith.cmpi slt, %196, %197 : vector<8x40xi32>
    %cst_32 = arith.constant 0.000000e+00 : f32
    %199 = vector.broadcast %cst_32 : f32 to vector<8x40xf32>
    %200 = arith.select %198, %195, %199 : vector<8x40xi1>, vector<8x40xf32>
    %201 = vector.extract_strided_slice %200 {offsets = [0, 0], sizes = [2, 40], strides = [1, 1]} : vector<8x40xf32> to vector<2x40xf32>
    %c0_33 = arith.constant 0 : index
    %c0_34 = arith.constant 0 : index
    %202 = vector.load %arg7[%c0_33, %c0_34] : memref<2x40xf32, #tpu.memory_space<vmem>>, vector<2x40xf32>
    tpu.vector_store %arg7[%c0_33, %c0_34], %201 {strides = array<i32>} : memref<2x40xf32, #tpu.memory_space<vmem>>, vector<2x40xf32>,
    return
  }
}

</mosaic_0001>

<llo_original>
// kernel: gru_model_forward.1
$region0: #{gru_model_forward.1}
  #allocation0 [shape = 'u32[]', space=smem, size = 0x4, offset = 0x4, fixed_abs, tag = 'smem constant byte address 0x4 - core index']
  #allocation1 [shape = 'u32[72,128]{1,0:T(1,128)}', space=vmem, size = 0x9000, scoped, tag = 'internal scratch']
  #allocation2 [shape = 'f32[1]{0:T(128)S(6)}', space=smem, size = 0x200, scoped, tag = 'scoped memory for gru_model_forward.1']
  %s0 = inlined_call_operand.vmem [shape: f32[64,4], index: 0, kind: input, shape index: {}]
  %s1 = inlined_call_operand.vmem [shape: f32[4,96], index: 1, kind: input, shape index: {}]
  %s2 = inlined_call_operand.vmem [shape: f32[1,96], index: 2, kind: input, shape index: {}]
  %s3 = inlined_call_operand.vmem [shape: f32[32,96], index: 3, kind: input, shape index: {}]
  %s4 = inlined_call_operand.vmem [shape: f32[1,96], index: 4, kind: input, shape index: {}]
  %s5 = inlined_call_operand.vmem [shape: f32[256,40], index: 5, kind: input, shape index: {}]
  %s6 = inlined_call_operand.<no memory space> [shape: f32[1], index: 6, kind: input, shape index: {}]
  %s7 = inlined_call_operand.hbm [shape: f32[2,40], index: 7, kind: output, shape index: {}]
  %s8 = sld [smem:[#allocation0]]
  $region38: #{gru_model_forward.1} parent=0
    _
  %s10 = ssub.s32 1, %s8
  %s11 = scalar_select 0, %s10, %s8
  %12 = sst [smem:[#allocation2]] %s6
  $region1: #{gru_model_forward.1} parent=0
    #allocation3 [shape = 'u8[1024]{0}', space=vmem, size = 0x400, scoped, tag = 'output window, operand 0, single buffered']
    #allocation4 [shape = 's32[1]{0}', space=sflag, size = 0x4, scoped, tag = 'scoped memory for gru_model_forward.1']
    %13 = vsyncpa [#allocation4], 0
    // Predicated region
    $region2: #{gru_model_forward.1} parent=1 // pred_check
      _
    $region3: #{gru_model_forward.1} parent=1 // pred_check_branch
      %15 = sbr.rel (0) target = $region5
    $region4: #{gru_model_forward.1} parent=1 // pred_region
      _
    $region5: #{gru_model_forward.1} parent=1 // pred_fallthru
      _
    // Predicated region
    $region6: #{gru_model_forward.1} parent=1 // pred_check
      _
    $region7: #{gru_model_forward.1} parent=1 // pred_check_branch
      %17 = sbr.rel (0) target = $region9
    $region8: #{gru_model_forward.1} parent=1 // pred_region
      _
    $region9: #{gru_model_forward.1} parent=1 // pred_fallthru
      _
    // Predicated region
    $region10: #{gru_model_forward.1} parent=1 // pred_check
      _
    $region11: #{gru_model_forward.1} parent=1 // pred_check_branch
      %19 = sbr.rel (0) target = $region13
    $region12: #{gru_model_forward.1} parent=1 // pred_region
      _
    $region13: #{gru_model_forward.1} parent=1 // pred_fallthru
      _
    // Predicated region
    $region14: #{gru_model_forward.1} parent=1 // pred_check
      _
    $region15: #{gru_model_forward.1} parent=1 // pred_check_branch
      %21 = sbr.rel (0) target = $region17
    $region16: #{gru_model_forward.1} parent=1 // pred_region
      _
    $region17: #{gru_model_forward.1} parent=1 // pred_fallthru
      _
    // Predicated region
    $region18: #{gru_model_forward.1} parent=1 // pred_check
      _
    $region19: #{gru_model_forward.1} parent=1 // pred_check_branch
      %23 = sbr.rel (0) target = $region21
    $region20: #{gru_model_forward.1} parent=1 // pred_region
      _
    $region21: #{gru_model_forward.1} parent=1 // pred_fallthru
      _
    // Predicated region
    $region22: #{gru_model_forward.1} parent=1 // pred_check
      _
    $region23: #{gru_model_forward.1} parent=1 // pred_check_branch
      %25 = sbr.rel (0) target = $region25
    $region24: #{gru_model_forward.1} parent=1 // pred_region
      _
    $region25: #{gru_model_forward.1} parent=1 // pred_fallthru
      _
    // Predicated region
    $region26: #{gru_model_forward.1} parent=1 // pred_check
      _
    $region27: #{gru_model_forward.1} parent=1 // pred_check_branch
      %27 = sbr.rel (0) target = $region29
    $region28: #{gru_model_forward.1} parent=1 // pred_region
      _
    $region29: #{gru_model_forward.1} parent=1 // pred_fallthru
      _
    %v28 = vld [vmem:[%s1] sm:$0xf]
    %v29 = vld [vmem:[%s2] sm:$0x1]
    %v30 = vld [vmem:[%s3] sm:$0xff]
    %v31 = vld [vmem:[%s3 + $0x8] sm:$0xff]
    %v32 = vld [vmem:[%s3 + $0x10] sm:$0xff]
    %v33 = vld [vmem:[%s3 + $0x18] sm:$0xff]
    %v34 = vld [vmem:[%s4] sm:$0x1]
    %v35 = vld [vmem:[%s5] sm:$0xff]
    %v36 = vld [vmem:[%s5 + $0x8] sm:$0xff]
    %v37 = vld [vmem:[%s5 + $0x10] sm:$0xff]
    %v38 = vld [vmem:[%s5 + $0x18] sm:$0xff]
    %v39 = vld [vmem:[%s5 + $0x20] sm:$0xff]
    %v40 = vld [vmem:[%s5 + $0x28] sm:$0xff]
    %v41 = vld [vmem:[%s5 + $0x30] sm:$0xff]
    %v42 = vld [vmem:[%s5 + $0x38] sm:$0xff]
    %v43 = vld [vmem:[%s5 + $0x40] sm:$0xff]
    %v44 = vld [vmem:[%s5 + $0x48] sm:$0xff]
    %v45 = vld [vmem:[%s5 + $0x50] sm:$0xff]
    %v46 = vld [vmem:[%s5 + $0x58] sm:$0xff]
    %v47 = vld [vmem:[%s5 + $0x60] sm:$0xff]
    %v48 = vld [vmem:[%s5 + $0x68] sm:$0xff]
    %v49 = vld [vmem:[%s5 + $0x70] sm:$0xff]
    %v50 = vld [vmem:[%s5 + $0x78] sm:$0xff]
    %v51 = vld [vmem:[%s5 + $0x80] sm:$0xff]
    %v52 = vld [vmem:[%s5 + $0x88] sm:$0xff]
    %v53 = vld [vmem:[%s5 + $0x90] sm:$0xff]
    %v54 = vld [vmem:[%s5 + $0x98] sm:$0xff]
    %v55 = vld [vmem:[%s5 + $0xa0] sm:$0xff]
    %v56 = vld [vmem:[%s5 + $0xa8] sm:$0xff]
    %v57 = vld [vmem:[%s5 + $0xb0] sm:$0xff]
    %v58 = vld [vmem:[%s5 + $0xb8] sm:$0xff]
    %v59 = vld [vmem:[%s5 + $0xc0] sm:$0xff]
    %v60 = vld [vmem:[%s5 + $0xc8] sm:$0xff]
    %v61 = vld [vmem:[%s5 + $0xd0] sm:$0xff]
    %v62 = vld [vmem:[%s5 + $0xd8] sm:$0xff]
    %v63 = vld [vmem:[%s5 + $0xe0] sm:$0xff]
    %v64 = vld [vmem:[%s5 + $0xe8] sm:$0xff]
    %v65 = vld [vmem:[%s5 + $0xf0] sm:$0xff]
    %v66 = vld [vmem:[%s5 + $0xf8] sm:$0xff]
    %s67 = sld [smem:[#allocation2]]
    %v68 = vld [vmem:[%s0] sm:$0xff]
    %v69 = vld [vmem:[%s0 + $0x8] sm:$0xff]
    %v70 = vld [vmem:[%s0 + $0x10] sm:$0xff]
    %v71 = vld [vmem:[%s0 + $0x18] sm:$0xff]
    %v72 = vld [vmem:[%s0 + $0x20] sm:$0xff]
    %v73 = vld [vmem:[%s0 + $0x28] sm:$0xff]
    %v74 = vld [vmem:[%s0 + $0x30] sm:$0xff]
    %v75 = vld [vmem:[%s0 + $0x38] sm:$0xff]
    %v77 = vperm.slane %v29, 0
    %vm79 = vcmask 31744
    %v81 = vsel %vm79, %v68, 0
    %v84 = vsel %vm79, %v69, 0
    %v87 = vsel %vm79, %v70, 0
    %v90 = vsel %vm79, %v71, 0
    %v93 = vsel %vm79, %v72, 0
    %v96 = vsel %vm79, %v73, 0
    %v99 = vsel %vm79, %v74, 0
    %v102 = vsel %vm79, %v75, 0
    %vm104 = vcmask 1043456
    %v106 = vsel %vm104, %v28, 0
    %108 = vmatpush.msra.mxu0 0.0
    %109 = vmatpush.msra.mxu0 0.0
    %110 = vmatpush.msra.mxu0 0.0
    %111 = vmatpush.msra.mxu0 0.0
    %112 = vmatpush.msra.mxu0 0.0
    %113 = vmatpush.msra.mxu0 0.0
    %114 = vmatpush.msra.mxu0 0.0
    %115 = vmatpush.msra.mxu0 0.0
    %116 = vmatpush.msra.mxu0 0.0
    %117 = vmatpush.msra.mxu0 0.0
    %118 = vmatpush.msra.mxu0 0.0
    %119 = vmatpush.msra.mxu0 0.0
    %120 = vmatpush.msra.mxu0 0.0
    %121 = vmatpush.msra.mxu0 0.0
    %122 = vmatpush.msra.mxu0 0.0
    %123 = vmatpush.msra.mxu0 %v106
    %124 = vmatmul.f32.gmra.mxu0 %v81
    %v125 = vpop.f32.mrf.mxu0
    %v126 = vadd.f32 %v77, %v125
    %127 = vmatmul.f32.gmra.mxu0 %v84
    %v128 = vpop.f32.mrf.mxu0
    %v129 = vadd.f32 %v77, %v128
    %130 = vmatmul.f32.gmra.mxu0 %v87
    %v131 = vpop.f32.mrf.mxu0
    %v132 = vadd.f32 %v77, %v131
    %133 = vmatmul.f32.gmra.mxu0 %v90
    %v134 = vpop.f32.mrf.mxu0
    %v135 = vadd.f32 %v77, %v134
    %136 = vmatmul.f32.gmra.mxu0 %v93
    %v137 = vpop.f32.mrf.mxu0
    %v138 = vadd.f32 %v77, %v137
    %139 = vmatmul.f32.gmra.mxu0 %v96
    %v140 = vpop.f32.mrf.mxu0
    %v141 = vadd.f32 %v77, %v140
    %142 = vmatmul.f32.gmra.mxu0 %v99
    %v143 = vpop.f32.mrf.mxu0
    %v144 = vadd.f32 %v77, %v143
    %145 = vmatmul.f32.gmra.mxu0 %v102
    %v146 = vpop.f32.mrf.mxu0
    %v147 = vadd.f32 %v77, %v146
    %148 = vdwg.mxu0
    %v150 = vperm.slane %v34, 0
    %vm152 = vcmask 261120
    %v154 = vsel %vm152, 0.0, 0
    %156 = vmatpush.msra.mxu0 0.0
    %157 = vmatpush.msra.mxu0 0.0
    %158 = vmatpush.msra.mxu0 0.0
    %159 = vmatpush.msra.mxu0 0.0
    %160 = vmatpush.msra.mxu0 0.0
    %161 = vmatpush.msra.mxu0 0.0
    %162 = vmatpush.msra.mxu0 0.0
    %163 = vmatpush.msra.mxu0 0.0
    %164 = vmatpush.msra.mxu0 0.0
    %165 = vmatpush.msra.mxu0 0.0
    %166 = vmatpush.msra.mxu0 0.0
    %167 = vmatpush.msra.mxu0 0.0
    %168 = vmatpush.msra.mxu0 %v33
    %169 = vmatpush.msra.mxu0 %v32
    %170 = vmatpush.msra.mxu0 %v31
    %171 = vmatpush.msra.mxu0 %v30
    %172 = vmatmul.f32.gmra.mxu0 %v154
    %v173 = vpop.f32.mrf.mxu0
    %v174 = vadd.f32 %v150, %v173
    %175 = vdwg.mxu0
    %v176 = vadd.f32 %v126, %v174
    %v177 = vxor.u32 %v176, 2147483648
    %v178 = vmul.f32 %v177, 1.442695
    %v179 = vpow.pop %v178
    %v180 = vadd.f32 %v179, 1.0
    %v181 = vrcp.pop %v180
    %v182 = vmul.f32 %v180, %v181
    %v183 = vsub.f32 1.0, %v182
    %v184 = vmul.f32 %v181, %v183
    %v185 = vadd.f32 %v181, %v184
    %vm186 = vweird.f32 %v180
    %vm187 = vweird.f32 %v181
    %vm188 = vmor %vm186, %vm187
    %v189 = vsel %vm188, %v181, %v185
    %v190 = vand.u32 2147483647, %v180
    %vm191 = vcmp.eq.f32.partialorder %v190, 8.507059e+37
    %v192 = vand.u32 %v180, 2147483648
    %v193 = vor.u32 1.1754944e-38, %v192
    %v194 = vsel %vm191, %v193, %v189
    %v195 = vmul.f32 1.0, %v194
    %197 = vrot.lane.b32.xlu0 %v174, 64
    %v198 = vpop.permute.xlu0 %197
    %v200 = vmul.f32 %v195, %v198
    %202 = vrot.lane.b32.xlu0 %v200, 64
    %v203 = vpop.permute.xlu0 %202
    %v205 = vadd.f32 %v126, %v203
    %v206 = vtanh.pop %v205
    %v207 = vsub.f32 0.0, %v206
    %209 = vrot.lane.b32.xlu0 %v207, 96
    %v210 = vpop.permute.xlu0 %209
    %v212 = vmul.f32 %v195, %v210
    %214 = vrot.lane.b32.xlu0 %v212, 32
    %v215 = vpop.permute.xlu0 %214
    %v217 = vadd.f32 %v206, %v215
    %219 = vrot.lane.b32.xlu0 %v217, 64
    %v220 = vpop.permute.xlu0 %219
    %v221 = vsel %vm152, %v220, 0
    %223 = vmatpush.msra.mxu0 0.0
    %224 = vmatpush.msra.mxu0 0.0
    %225 = vmatpush.msra.mxu0 0.0
    %226 = vmatpush.msra.mxu0 0.0
    %227 = vmatpush.msra.mxu0 0.0
    %228 = vmatpush.msra.mxu0 0.0
    %229 = vmatpush.msra.mxu0 0.0
    %230 = vmatpush.msra.mxu0 0.0
    %231 = vmatpush.msra.mxu0 0.0
    %232 = vmatpush.msra.mxu0 0.0
    %233 = vmatpush.msra.mxu0 0.0
    %234 = vmatpush.msra.mxu0 0.0
    %235 = vmatpush.msra.mxu0 %v33
    %236 = vmatpush.msra.mxu0 %v32
    %237 = vmatpush.msra.mxu0 %v31
    %238 = vmatpush.msra.mxu0 %v30
    %239 = vmatmul.f32.gmra.mxu0 %v221
    %v240 = vpop.f32.mrf.mxu0
    %v241 = vadd.f32 %v150, %v240
    %242 = vdwg.mxu0
    %v243 = vadd.f32 %v129, %v241
    %v244 = vxor.u32 %v243, 2147483648
    %v245 = vmul.f32 %v244, 1.442695
    %v246 = vpow.pop %v245
    %v247 = vadd.f32 %v246, 1.0
    %v248 = vrcp.pop %v247
    %v249 = vmul.f32 %v247, %v248
    %v250 = vsub.f32 1.0, %v249
    %v251 = vmul.f32 %v248, %v250
    %v252 = vadd.f32 %v248, %v251
    %vm253 = vweird.f32 %v247
    %vm254 = vweird.f32 %v248
    %vm255 = vmor %vm253, %vm254
    %v256 = vsel %vm255, %v248, %v252
    %v257 = vand.u32 2147483647, %v247
    %vm258 = vcmp.eq.f32.partialorder %v257, 8.507059e+37
    %v259 = vand.u32 %v247, 2147483648
    %v260 = vor.u32 1.1754944e-38, %v259
    %v261 = vsel %vm258, %v260, %v256
    %v262 = vmul.f32 1.0, %v261
    %264 = vrot.lane.b32.xlu0 %v241, 64
    %v265 = vpop.permute.xlu0 %264
    %v267 = vmul.f32 %v262, %v265
    %269 = vrot.lane.b32.xlu0 %v267, 64
    %v270 = vpop.permute.xlu0 %269
    %v272 = vadd.f32 %v129, %v270
    %v273 = vtanh.pop %v272
    %v274 = vsub.f32 %v217, %v273
    %276 = vrot.lane.b32.xlu0 %v274, 96
    %v277 = vpop.permute.xlu0 %276
    %v279 = vmul.f32 %v262, %v277
    %281 = vrot.lane.b32.xlu0 %v279, 32
    %v282 = vpop.permute.xlu0 %281
    %v284 = vadd.f32 %v273, %v282
    %286 = vrot.lane.b32.xlu0 %v284, 64
    %v287 = vpop.permute.xlu0 %286
    %v288 = vsel %vm152, %v287, 0
    %290 = vmatpush.msra.mxu0 0.0
    %291 = vmatpush.msra.mxu0 0.0
    %292 = vmatpush.msra.mxu0 0.0
    %293 = vmatpush.msra.mxu0 0.0
    %294 = vmatpush.msra.mxu0 0.0
    %295 = vmatpush.msra.mxu0 0.0
    %296 = vmatpush.msra.mxu0 0.0
    %297 = vmatpush.msra.mxu0 0.0
    %298 = vmatpush.msra.mxu0 0.0
    %299 = vmatpush.msra.mxu0 0.0
    %300 = vmatpush.msra.mxu0 0.0
    %301 = vmatpush.msra.mxu0 0.0
    %302 = vmatpush.msra.mxu0 %v33
    %303 = vmatpush.msra.mxu0 %v32
    %304 = vmatpush.msra.mxu0 %v31
    %305 = vmatpush.msra.mxu0 %v30
    %306 = vmatmul.f32.gmra.mxu0 %v288
    %v307 = vpop.f32.mrf.mxu0
    %v308 = vadd.f32 %v150, %v307
    %309 = vdwg.mxu0
    %v310 = vadd.f32 %v132, %v308
    %v311 = vxor.u32 %v310, 2147483648
    %v312 = vmul.f32 %v311, 1.442695
    %v313 = vpow.pop %v312
    %v314 = vadd.f32 %v313, 1.0
    %v315 = vrcp.pop %v314
    %v316 = vmul.f32 %v314, %v315
    %v317 = vsub.f32 1.0, %v316
    %v318 = vmul.f32 %v315, %v317
    %v319 = vadd.f32 %v315, %v318
    %vm320 = vweird.f32 %v314
    %vm321 = vweird.f32 %v315
    %vm322 = vmor %vm320, %vm321
    %v323 = vsel %vm322, %v315, %v319
    %v324 = vand.u32 2147483647, %v314
    %vm325 = vcmp.eq.f32.partialorder %v324, 8.507059e+37
    %v326 = vand.u32 %v314, 2147483648
    %v327 = vor.u32 1.1754944e-38, %v326
    %v328 = vsel %vm325, %v327, %v323
    %v329 = vmul.f32 1.0, %v328
    %331 = vrot.lane.b32.xlu0 %v308, 64
    %v332 = vpop.permute.xlu0 %331
    %v334 = vmul.f32 %v329, %v332
    %336 = vrot.lane.b32.xlu0 %v334, 64
    %v337 = vpop.permute.xlu0 %336
    %v339 = vadd.f32 %v132, %v337
    %v340 = vtanh.pop %v339
    %v341 = vsub.f32 %v284, %v340
    %343 = vrot.lane.b32.xlu0 %v341, 96
    %v344 = vpop.permute.xlu0 %343
    %v346 = vmul.f32 %v329, %v344
    %348 = vrot.lane.b32.xlu0 %v346, 32
    %v349 = vpop.permute.xlu0 %348
    %v351 = vadd.f32 %v340, %v349
    %353 = vrot.lane.b32.xlu0 %v351, 64
    %v354 = vpop.permute.xlu0 %353
    %v355 = vsel %vm152, %v354, 0
    %357 = vmatpush.msra.mxu0 0.0
    %358 = vmatpush.msra.mxu0 0.0
    %359 = vmatpush.msra.mxu0 0.0
    %360 = vmatpush.msra.mxu0 0.0
    %361 = vmatpush.msra.mxu0 0.0
    %362 = vmatpush.msra.mxu0 0.0
    %363 = vmatpush.msra.mxu0 0.0
    %364 = vmatpush.msra.mxu0 0.0
    %365 = vmatpush.msra.mxu0 0.0
    %366 = vmatpush.msra.mxu0 0.0
    %367 = vmatpush.msra.mxu0 0.0
    %368 = vmatpush.msra.mxu0 0.0
    %369 = vmatpush.msra.mxu0 %v33
    %370 = vmatpush.msra.mxu0 %v32
    %371 = vmatpush.msra.mxu0 %v31
    %372 = vmatpush.msra.mxu0 %v30
    %373 = vmatmul.f32.gmra.mxu0 %v355
    %v374 = vpop.f32.mrf.mxu0
    %v375 = vadd.f32 %v150, %v374
    %376 = vdwg.mxu0
    %v377 = vadd.f32 %v135, %v375
    %v378 = vxor.u32 %v377, 2147483648
    %v379 = vmul.f32 %v378, 1.442695
    %v380 = vpow.pop %v379
    %v381 = vadd.f32 %v380, 1.0
    %v382 = vrcp.pop %v381
    %v383 = vmul.f32 %v381, %v382
    %v384 = vsub.f32 1.0, %v383
    %v385 = vmul.f32 %v382, %v384
    %v386 = vadd.f32 %v382, %v385
    %vm387 = vweird.f32 %v381
    %vm388 = vweird.f32 %v382
    %vm389 = vmor %vm387, %vm388
    %v390 = vsel %vm389, %v382, %v386
    %v391 = vand.u32 2147483647, %v381
    %vm392 = vcmp.eq.f32.partialorder %v391, 8.507059e+37
    %v393 = vand.u32 %v381, 2147483648
    %v394 = vor.u32 1.1754944e-38, %v393
    %v395 = vsel %vm392, %v394, %v390
    %v396 = vmul.f32 1.0, %v395
    %398 = vrot.lane.b32.xlu0 %v375, 64
    %v399 = vpop.permute.xlu0 %398
    %v401 = vmul.f32 %v396, %v399
    %403 = vrot.lane.b32.xlu0 %v401, 64
    %v404 = vpop.permute.xlu0 %403
    %v406 = vadd.f32 %v135, %v404
    %v407 = vtanh.pop %v406
    %v408 = vsub.f32 %v351, %v407
    %410 = vrot.lane.b32.xlu0 %v408, 96
    %v411 = vpop.permute.xlu0 %410
    %v413 = vmul.f32 %v396, %v411
    %415 = vrot.lane.b32.xlu0 %v413, 32
    %v416 = vpop.permute.xlu0 %415
    %v418 = vadd.f32 %v407, %v416
    %420 = vrot.lane.b32.xlu0 %v418, 64
    %v421 = vpop.permute.xlu0 %420
    %v422 = vsel %vm152, %v421, 0
    %424 = vmatpush.msra.mxu0 0.0
    %425 = vmatpush.msra.mxu0 0.0
    %426 = vmatpush.msra.mxu0 0.0
    %427 = vmatpush.msra.mxu0 0.0
    %428 = vmatpush.msra.mxu0 0.0
    %429 = vmatpush.msra.mxu0 0.0
    %430 = vmatpush.msra.mxu0 0.0
    %431 = vmatpush.msra.mxu0 0.0
    %432 = vmatpush.msra.mxu0 0.0
    %433 = vmatpush.msra.mxu0 0.0
    %434 = vmatpush.msra.mxu0 0.0
    %435 = vmatpush.msra.mxu0 0.0
    %436 = vmatpush.msra.mxu0 %v33
    %437 = vmatpush.msra.mxu0 %v32
    %438 = vmatpush.msra.mxu0 %v31
    %439 = vmatpush.msra.mxu0 %v30
    %440 = vmatmul.f32.gmra.mxu0 %v422
    %v441 = vpop.f32.mrf.mxu0
    %v442 = vadd.f32 %v150, %v441
    %443 = vdwg.mxu0
    %v444 = vadd.f32 %v138, %v442
    %v445 = vxor.u32 %v444, 2147483648
    %v446 = vmul.f32 %v445, 1.442695
    %v447 = vpow.pop %v446
    %v448 = vadd.f32 %v447, 1.0
    %v449 = vrcp.pop %v448
    %v450 = vmul.f32 %v448, %v449
    %v451 = vsub.f32 1.0, %v450
    %v452 = vmul.f32 %v449, %v451
    %v453 = vadd.f32 %v449, %v452
    %vm454 = vweird.f32 %v448
    %vm455 = vweird.f32 %v449
    %vm456 = vmor %vm454, %vm455
    %v457 = vsel %vm456, %v449, %v453
    %v458 = vand.u32 2147483647, %v448
    %vm459 = vcmp.eq.f32.partialorder %v458, 8.507059e+37
    %v460 = vand.u32 %v448, 2147483648
    %v461 = vor.u32 1.1754944e-38, %v460
    %v462 = vsel %vm459, %v461, %v457
    %v463 = vmul.f32 1.0, %v462
    %465 = vrot.lane.b32.xlu0 %v442, 64
    %v466 = vpop.permute.xlu0 %465
    %v468 = vmul.f32 %v463, %v466
    %470 = vrot.lane.b32.xlu0 %v468, 64
    %v471 = vpop.permute.xlu0 %470
    %v473 = vadd.f32 %v138, %v471
    %v474 = vtanh.pop %v473
    %v475 = vsub.f32 %v418, %v474
    %477 = vrot.lane.b32.xlu0 %v475, 96
    %v478 = vpop.permute.xlu0 %477
    %v480 = vmul.f32 %v463, %v478
    %482 = vrot.lane.b32.xlu0 %v480, 32
    %v483 = vpop.permute.xlu0 %482
    %v485 = vadd.f32 %v474, %v483
    %487 = vrot.lane.b32.xlu0 %v485, 64
    %v488 = vpop.permute.xlu0 %487
    %v489 = vsel %vm152, %v488, 0
    %491 = vmatpush.msra.mxu0 0.0
    %492 = vmatpush.msra.mxu0 0.0
    %493 = vmatpush.msra.mxu0 0.0
    %494 = vmatpush.msra.mxu0 0.0
    %495 = vmatpush.msra.mxu0 0.0
    %496 = vmatpush.msra.mxu0 0.0
    %497 = vmatpush.msra.mxu0 0.0
    %498 = vmatpush.msra.mxu0 0.0
    %499 = vmatpush.msra.mxu0 0.0
    %500 = vmatpush.msra.mxu0 0.0
    %501 = vmatpush.msra.mxu0 0.0
    %502 = vmatpush.msra.mxu0 0.0
    %503 = vmatpush.msra.mxu0 %v33
    %504 = vmatpush.msra.mxu0 %v32
    %505 = vmatpush.msra.mxu0 %v31
    %506 = vmatpush.msra.mxu0 %v30
    %507 = vmatmul.f32.gmra.mxu0 %v489
    %v508 = vpop.f32.mrf.mxu0
    %v509 = vadd.f32 %v150, %v508
    %510 = vdwg.mxu0
    %v511 = vadd.f32 %v141, %v509
    %v512 = vxor.u32 %v511, 2147483648
    %v513 = vmul.f32 %v512, 1.442695
    %v514 = vpow.pop %v513
    %v515 = vadd.f32 %v514, 1.0
    %v516 = vrcp.pop %v515
    %v517 = vmul.f32 %v515, %v516
    %v518 = vsub.f32 1.0, %v517
    %v519 = vmul.f32 %v516, %v518
    %v520 = vadd.f32 %v516, %v519
    %vm521 = vweird.f32 %v515
    %vm522 = vweird.f32 %v516
    %vm523 = vmor %vm521, %vm522
    %v524 = vsel %vm523, %v516, %v520
    %v525 = vand.u32 2147483647, %v515
    %vm526 = vcmp.eq.f32.partialorder %v525, 8.507059e+37
    %v527 = vand.u32 %v515, 2147483648
    %v528 = vor.u32 1.1754944e-38, %v527
    %v529 = vsel %vm526, %v528, %v524
    %v530 = vmul.f32 1.0, %v529
    %532 = vrot.lane.b32.xlu0 %v509, 64
    %v533 = vpop.permute.xlu0 %532
    %v535 = vmul.f32 %v530, %v533
    %537 = vrot.lane.b32.xlu0 %v535, 64
    %v538 = vpop.permute.xlu0 %537
    %v540 = vadd.f32 %v141, %v538
    %v541 = vtanh.pop %v540
    %v542 = vsub.f32 %v485, %v541
    %544 = vrot.lane.b32.xlu0 %v542, 96
    %v545 = vpop.permute.xlu0 %544
    %v547 = vmul.f32 %v530, %v545
    %549 = vrot.lane.b32.xlu0 %v547, 32
    %v550 = vpop.permute.xlu0 %549
    %v552 = vadd.f32 %v541, %v550
    %554 = vrot.lane.b32.xlu0 %v552, 64
    %v555 = vpop.permute.xlu0 %554
    %v556 = vsel %vm152, %v555, 0
    %558 = vmatpush.msra.mxu0 0.0
    %559 = vmatpush.msra.mxu0 0.0
    %560 = vmatpush.msra.mxu0 0.0
    %561 = vmatpush.msra.mxu0 0.0
    %562 = vmatpush.msra.mxu0 0.0
    %563 = vmatpush.msra.mxu0 0.0
    %564 = vmatpush.msra.mxu0 0.0
    %565 = vmatpush.msra.mxu0 0.0
    %566 = vmatpush.msra.mxu0 0.0
    %567 = vmatpush.msra.mxu0 0.0
    %568 = vmatpush.msra.mxu0 0.0
    %569 = vmatpush.msra.mxu0 0.0
    %570 = vmatpush.msra.mxu0 %v33
    %571 = vmatpush.msra.mxu0 %v32
    %572 = vmatpush.msra.mxu0 %v31
    %573 = vmatpush.msra.mxu0 %v30
    %574 = vmatmul.f32.gmra.mxu0 %v556
    %v575 = vpop.f32.mrf.mxu0
    %v576 = vadd.f32 %v150, %v575
    %577 = vdwg.mxu0
    %v578 = vadd.f32 %v144, %v576
    %v579 = vxor.u32 %v578, 2147483648
    %v580 = vmul.f32 %v579, 1.442695
    %v581 = vpow.pop %v580
    %v582 = vadd.f32 %v581, 1.0
    %v583 = vrcp.pop %v582
    %v584 = vmul.f32 %v582, %v583
    %v585 = vsub.f32 1.0, %v584
    %v586 = vmul.f32 %v583, %v585
    %v587 = vadd.f32 %v583, %v586
    %vm588 = vweird.f32 %v582
    %vm589 = vweird.f32 %v583
    %vm590 = vmor %vm588, %vm589
    %v591 = vsel %vm590, %v583, %v587
    %v592 = vand.u32 2147483647, %v582
    %vm593 = vcmp.eq.f32.partialorder %v592, 8.507059e+37
    %v594 = vand.u32 %v582, 2147483648
    %v595 = vor.u32 1.1754944e-38, %v594
    %v596 = vsel %vm593, %v595, %v591
    %v597 = vmul.f32 1.0, %v596
    %599 = vrot.lane.b32.xlu0 %v576, 64
    %v600 = vpop.permute.xlu0 %599
    %v602 = vmul.f32 %v597, %v600
    %604 = vrot.lane.b32.xlu0 %v602, 64
    %v605 = vpop.permute.xlu0 %604
    %v607 = vadd.f32 %v144, %v605
    %v608 = vtanh.pop %v607
    %v609 = vsub.f32 %v552, %v608
    %611 = vrot.lane.b32.xlu0 %v609, 96
    %v612 = vpop.permute.xlu0 %611
    %v614 = vmul.f32 %v597, %v612
    %616 = vrot.lane.b32.xlu0 %v614, 32
    %v617 = vpop.permute.xlu0 %616
    %v619 = vadd.f32 %v608, %v617
    %621 = vrot.lane.b32.xlu0 %v619, 64
    %v622 = vpop.permute.xlu0 %621
    %v623 = vsel %vm152, %v622, 0
    %625 = vmatpush.msra.mxu0 0.0
    %626 = vmatpush.msra.mxu0 0.0
    %627 = vmatpush.msra.mxu0 0.0
    %628 = vmatpush.msra.mxu0 0.0
    %629 = vmatpush.msra.mxu0 0.0
    %630 = vmatpush.msra.mxu0 0.0
    %631 = vmatpush.msra.mxu0 0.0
    %632 = vmatpush.msra.mxu0 0.0
    %633 = vmatpush.msra.mxu0 0.0
    %634 = vmatpush.msra.mxu0 0.0
    %635 = vmatpush.msra.mxu0 0.0
    %636 = vmatpush.msra.mxu0 0.0
    %637 = vmatpush.msra.mxu0 %v33
    %638 = vmatpush.msra.mxu0 %v32
    %639 = vmatpush.msra.mxu0 %v31
    %640 = vmatpush.msra.mxu0 %v30
    %641 = vmatmul.f32.gmra.mxu0 %v623
    %v642 = vpop.f32.mrf.mxu0
    %v643 = vadd.f32 %v150, %v642
    %644 = vdwg.mxu0
    %v645 = vadd.f32 %v147, %v643
    %v646 = vxor.u32 %v645, 2147483648
    %v647 = vmul.f32 %v646, 1.442695
    %v648 = vpow.pop %v647
    %v649 = vadd.f32 %v648, 1.0
    %v650 = vrcp.pop %v649
    %v651 = vmul.f32 %v649, %v650
    %v652 = vsub.f32 1.0, %v651
    %v653 = vmul.f32 %v650, %v652
    %v654 = vadd.f32 %v650, %v653
    %vm655 = vweird.f32 %v649
    %vm656 = vweird.f32 %v650
    %vm657 = vmor %vm655, %vm656
    %v658 = vsel %vm657, %v650, %v654
    %v659 = vand.u32 2147483647, %v649
    %vm660 = vcmp.eq.f32.partialorder %v659, 8.507059e+37
    %v661 = vand.u32 %v649, 2147483648
    %v662 = vor.u32 1.1754944e-38, %v661
    %v663 = vsel %vm660, %v662, %v658
    %v664 = vmul.f32 1.0, %v663
    %666 = vrot.lane.b32.xlu0 %v643, 64
    %v667 = vpop.permute.xlu0 %666
    %v669 = vmul.f32 %v664, %v667
    %671 = vrot.lane.b32.xlu0 %v669, 64
    %v672 = vpop.permute.xlu0 %671
    %v674 = vadd.f32 %v147, %v672
    %v675 = vtanh.pop %v674
    %v676 = vsub.f32 %v619, %v675
    %678 = vrot.lane.b32.xlu0 %v676, 96
    %v679 = vpop.permute.xlu0 %678
    %v681 = vmul.f32 %v664, %v679
    %683 = vrot.lane.b32.xlu0 %v681, 32
    %v684 = vpop.permute.xlu0 %683
    %v686 = vadd.f32 %v675, %v684
    %688 = vrot.lane.b32.xlu0 %v284, 96
    %v689 = vpop.permute.xlu0 %688
    %691 = vrot.lane.b32.xlu0 %v418, 32
    %v692 = vpop.permute.xlu0 %691
    %695 = vrot.lane.b32.xlu0 %v552, 96
    %v696 = vpop.permute.xlu0 %695
    %699 = vrot.lane.b32.xlu0 %v686, 32
    %v700 = vpop.permute.xlu0 %699
    %v702 = vsel %vm152, %v220, %v689
    %vm703 = vcmask 523264
    %v704 = vsel %vm703, %v702, %v351
    %vm705 = vcmask 785408
    %v706 = vsel %vm705, %v704, %v692
    %v707 = vsel %vm152, %v488, %v696
    %v708 = vsel %vm703, %v707, %v619
    %v709 = vsel %vm705, %v708, %v700
    %v710 = vstv %s67
    %711 = vmatpush.msra.mxu0 %v50
    %712 = vmatpush.msra.mxu0 %v49
    %713 = vmatpush.msra.mxu0 %v48
    %714 = vmatpush.msra.mxu0 %v47
    %715 = vmatpush.msra.mxu0 %v46
    %716 = vmatpush.msra.mxu0 %v45
    %717 = vmatpush.msra.mxu0 %v44
    %718 = vmatpush.msra.mxu0 %v43
    %719 = vmatpush.msra.mxu0 %v42
    %720 = vmatpush.msra.mxu0 %v41
    %721 = vmatpush.msra.mxu0 %v40
    %722 = vmatpush.msra.mxu0 %v39
    %723 = vmatpush.msra.mxu0 %v38
    %724 = vmatpush.msra.mxu0 %v37
    %725 = vmatpush.msra.mxu0 %v36
    %726 = vmatpush.msra.mxu0 %v35
    %727 = vmatmul.f32.gmra.mxu0 %v706
    %v728 = vpop.f32.mrf.mxu0
    %v729 = vadd.f32 %v710, %v728
    %730 = vdwg.mxu0
    %731 = vmatpush.msra.mxu0 %v66
    %732 = vmatpush.msra.mxu0 %v65
    %733 = vmatpush.msra.mxu0 %v64
    %734 = vmatpush.msra.mxu0 %v63
    %735 = vmatpush.msra.mxu0 %v62
    %736 = vmatpush.msra.mxu0 %v61
    %737 = vmatpush.msra.mxu0 %v60
    %738 = vmatpush.msra.mxu0 %v59
    %739 = vmatpush.msra.mxu0 %v58
    %740 = vmatpush.msra.mxu0 %v57
    %741 = vmatpush.msra.mxu0 %v56
    %742 = vmatpush.msra.mxu0 %v55
    %743 = vmatpush.msra.mxu0 %v54
    %744 = vmatpush.msra.mxu0 %v53
    %745 = vmatpush.msra.mxu0 %v52
    %746 = vmatpush.msra.mxu0 %v51
    %747 = vmatmul.f32.gmra.mxu0 %v709
    %v748 = vpop.f32.mrf.mxu0
    %v749 = vadd.f32 %v729, %v748
    %750 = vdwg.mxu0
    %vm751 = vcmp.ge.f32.partialorder %v749, 0.0
    %v752 = vmul.f32 %v749, 0.01
    %v753 = vsel %vm751, %v749, %v752
    %v754 = vlaneseq
    %v755 = vand.u32 %v754, 127
    %vm756 = vcmp.lt.s32.totalorder %v755, 8
    %v757 = vsel %vm756, %v753, 0.0
    %vm758 = vcmask 320512
    %759 = vst.msk [vmem:[#allocation3] sm:$0x3] %vm758, %v757
    // Predicated region
    $region30: #{gru_model_forward.1} parent=1 // pred_check
      _
    $region31: #{gru_model_forward.1} parent=1 // pred_check_branch
      %761 = sbr.rel (0) target = $region33
    $region32: #{gru_model_forward.1} parent=1 // pred_region
      %763 = vsyncadd [#allocation4], 0
      %s765 = sshll.u32 [#allocation3], 4
      %s766 = int_to_ptr.vmem [resolvable:$true] %s765
      %s767 = sshll.u32 %s7, 4
      %s768 = int_to_ptr.hbm [resolvable:$true] %s767
      %770 = dma.vmem_to_hbm [thread:$0]  %s766, 32, %s768, [#allocation4]
    $region33: #{gru_model_forward.1} parent=1 // pred_fallthru
      _
    // Predicated region
    $region34: #{gru_model_forward.1} parent=1 // pred_check
      _
    $region35: #{gru_model_forward.1} parent=1 // pred_check_branch
      %772 = sbr.rel (0) target = $region37
    $region36: #{gru_model_forward.1} parent=1 // pred_region
      %774 = dma.done [#allocation4], 32
    $region37: #{gru_model_forward.1} parent=1 // pred_fallthru
      _
    %775 = vsyncpa [#allocation4], 1

</llo_original>
